<compile_context>
chip_gen: v5e
topology: v5e:2x2
jax: 0.10.0
libtpu: 0.0.40
codegen_flags: <defaults>
</compile_context>

<pallas_src>
import functools

import jax
import jax.numpy as jnp
from jax.experimental import pallas as pl
from jax.experimental.pallas import tpu as pltpu


def _round_up(a, m):
    return ((a + m - 1) // m) * m


def pack_unit_gaussian_params(w_mu, b_mu, w_lv, b_lv):
    """One-time packing into a lane-dense fused projection.

    Returns (w_packed, b_packed) with shapes (C, 2*Lp) and (1, 2*Lp),
    Lp = round_up(L, 128).  Columns [0, L) hold the mu projection,
    [Lp, Lp+L) the logvar projection, the rest are zeros.
    """
    C, L = w_mu.shape
    Lp = _round_up(L, 128)
    w = jnp.zeros((C, 2 * Lp), w_mu.dtype)
    w = w.at[:, :L].set(w_mu).at[:, Lp:Lp + L].set(w_lv)
    b = jnp.zeros((1, 2 * Lp), b_mu.dtype)
    b = b.at[:, :L].set(b_mu.reshape(1, L)).at[:, Lp:Lp + L].set(b_lv.reshape(1, L))
    return w, b


def _pick_tile_n(N, requested=None):
    if requested is not None:
        return max(8, _round_up(int(requested), 8))
    if N <= 512:
        return _round_up(N, 8)        # single grid step; batch too small to split
    # >= 2 grid steps (DMA/compute overlap, v7x 2-TC sharding), 256-aligned
    # rows for full MXU passes, capped at 2048 rows per tile.
    return int(min(2048, _round_up(-(-N // 2), 256)))


def _train_kernel(x_ref, w_ref, b_ref, eps_ref, out_ref, *, L, Lp, mm_dtype):
    xv = x_ref[...]
    wv = w_ref[...]
    if mm_dtype is not None:
        xv = xv.astype(mm_dtype)
        wv = wv.astype(mm_dtype)
    # Single fused MXU dot -> (tn, 2*Lp), accumulate in f32.
    y = jnp.dot(xv, wv, preferred_element_type=jnp.float32)
    y = y + b_ref[...].astype(jnp.float32)
    mu = y[:, :L]
    logvar = y[:, Lp:Lp + L]
    sample = mu + jnp.exp(0.5 * logvar) * eps_ref[...].astype(jnp.float32)
    out_ref[...] = sample.astype(out_ref.dtype)


def _eval_kernel(x_ref, w_ref, b_ref, out_ref, *, L, mm_dtype):
    xv = x_ref[...]
    wv = w_ref[...]      # mu half only: (C, Lp)
    if mm_dtype is not None:
        xv = xv.astype(mm_dtype)
        wv = wv.astype(mm_dtype)
    y = jnp.dot(xv, wv, preferred_element_type=jnp.float32)
    y = y + b_ref[...].astype(jnp.float32)
    out_ref[...] = y[:, :L].astype(out_ref.dtype)


def unit_gaussian_prior_forward(x, w_packed, b_packed, num_latents, *,
                                training=True, eps=None, rng_key=None,
                                tile_n=None, matmul_dtype=None):
    """x: (N, C); w_packed: (C, 2*Lp); b_packed: (1, 2*Lp).  Returns (N, L)."""
    N, C = x.shape
    L = int(num_latents)
    two_lp = int(w_packed.shape[1])
    Lp = two_lp // 2
    assert Lp % 128 == 0 and Lp >= L, "params must come from pack_unit_gaussian_params"

    tn = _pick_tile_n(N, tile_n)
    grid = (int(pl.cdiv(N, tn)),)

    # VMEM budget: double-buffered x/eps/out tiles + (double-buffered) resident
    # packed weight/bias + f32 in-kernel intermediates (y, mu, logvar, sigma, ...),
    # capped at 56 MiB so it also fits v7x's 64 MiB physical VMEM.
    bytes_stream = tn * (C + 2 * L) * 4
    bytes_resident = (C * two_lp + two_lp) * 4
    bytes_interm = 6 * tn * two_lp * 4
    vmem_limit = 2 * bytes_stream + 2 * bytes_resident + bytes_interm + (4 << 20)
    vmem_limit = int(min(56 << 20, max(32 << 20, vmem_limit)))

    params = pltpu.CompilerParams(dimension_semantics=("parallel",),
                                  vmem_limit_bytes=vmem_limit)
    out_shape = jax.ShapeDtypeStruct((N, L), x.dtype)

    if not training:
        # Eval: only mu is needed -> BlockSpec selects the mu half of the packed
        # weight/bias (columns [0, Lp)), so the logvar half is never DMA'd.
        kernel = functools.partial(_eval_kernel, L=L, mm_dtype=matmul_dtype)
        return pl.pallas_call(
            kernel,
            out_shape=out_shape,
            grid=grid,
            in_specs=[
                pl.BlockSpec((tn, C), lambda i: (i, 0)),    # x tile (pipelined)
                pl.BlockSpec((C, Lp), lambda i: (0, 0)),    # mu weights (resident)
                pl.BlockSpec((1, Lp), lambda i: (0, 0)),    # mu bias (resident)
            ],
            out_specs=pl.BlockSpec((tn, L), lambda i: (i, 0)),
            compiler_params=params,
        )(x, w_packed, b_packed)

    if eps is None:
        if rng_key is None:
            rng_key = jax.random.PRNGKey(0)
        eps = jax.random.normal(rng_key, (N, L), dtype=jnp.float32)

    kernel = functools.partial(_train_kernel, L=L, Lp=Lp, mm_dtype=matmul_dtype)
    return pl.pallas_call(
        kernel,
        out_shape=out_shape,
        grid=grid,
        in_specs=[
            pl.BlockSpec((tn, C), lambda i: (i, 0)),        # x tile (pipelined)
            pl.BlockSpec((C, two_lp), lambda i: (0, 0)),    # fused weights (resident)
            pl.BlockSpec((1, two_lp), lambda i: (0, 0)),    # fused bias (resident)
            pl.BlockSpec((tn, L), lambda i: (i, 0)),        # eps tile (pipelined)
        ],
        out_specs=pl.BlockSpec((tn, L), lambda i: (i, 0)),
        compiler_params=params,
    )(x, w_packed, b_packed, eps)


if __name__ == "__main__":
    key = jax.random.PRNGKey(0)

    def make_params(k, C, L):
        # Kaiming-ish init of the (C, 2L) projection; mu-half bias = 0,
        # logvar-half bias = 1 (matches `bias.data[num_latents:].fill_(1)`).
        w_full = jax.random.normal(k, (C, 2 * L), dtype=jnp.float32) * jnp.sqrt(2.0 / C)
        return (w_full[:, :L], jnp.zeros((1, L), jnp.float32),
                w_full[:, L:], jnp.ones((1, L), jnp.float32))

    # --- Case 1: tiny module-like shape; L=16 is padded to 128 internally ---
    N, C, L = 2, 32, 16
    kx, kw, ke, kr, key = jax.random.split(key, 5)
    x = jax.random.normal(kx, (N, C), dtype=jnp.float32)
    w_mu, b_mu, w_lv, b_lv = make_params(kw, C, L)
    w, b = pack_unit_gaussian_params(w_mu, b_mu, w_lv, b_lv)   # one-time packing
    eps = jax.random.normal(ke, (N, L), dtype=jnp.float32)

    mu_ref = x @ w_mu + b_mu
    lv_ref = x @ w_lv + b_lv
    sig_ref = jnp.exp(0.5 * lv_ref)

    out_eval = unit_gaussian_prior_forward(x, w, b, L, training=False)
    out_eps = unit_gaussian_prior_forward(x, w, b, L, training=True, eps=eps)
    out_rng = unit_gaussian_prior_forward(x, w, b, L, training=True, rng_key=kr)
    jax.block_until_ready((out_eval, out_eps, out_rng))

    assert out_eval.shape == (N, L) and out_eps.shape == (N, L)
    assert jnp.allclose(out_eval, mu_ref, atol=5e-2, rtol=2e-2)
    assert jnp.allclose(out_eps, mu_ref + sig_ref * eps, atol=2e-1, rtol=5e-2)
    eps_rng = jax.random.normal(kr, (N, L), dtype=jnp.float32)
    assert jnp.allclose(out_rng, mu_ref + sig_ref * eps_rng, atol=2e-1, rtol=5e-2)

    # --- Case 2: multi-step grid with ragged last block (N=600), L=128 ---
    N2, C2, L2 = 600, 64, 128
    kx2, kw2, ke2, kr2, key = jax.random.split(key, 5)
    x2 = jax.random.normal(kx2, (N2, C2), dtype=jnp.float32)
    w_mu2, b_mu2, w_lv2, b_lv2 = make_params(kw2, C2, L2)
    w2, b2 = pack_unit_gaussian_params(w_mu2, b_mu2, w_lv2, b_lv2)
    eps2 = jax.random.normal(ke2, (N2, L2), dtype=jnp.float32)

    mu2 = x2 @ w_mu2 + b_mu2
    lv2 = x2 @ w_lv2 + b_lv2
    sig2 = jnp.exp(0.5 * lv2)

    out2_eval = unit_gaussian_prior_forward(x2, w2, b2, L2, training=False, tile_n=256)
    out2_eps = unit_gaussian_prior_forward(x2, w2, b2, L2, training=True, eps=eps2)   # auto tile -> grid 2, ragged
    out2_rng = unit_gaussian_prior_forward(x2, w2, b2, L2, training=True,
                                           rng_key=kr2, tile_n=256)
    out2_bf16 = unit_gaussian_prior_forward(x2, w2, b2, L2, training=False,
                                            tile_n=256, matmul_dtype=jnp.bfloat16)
    jax.block_until_ready((out2_eval, out2_eps, out2_rng, out2_bf16))

    assert out2_eval.shape == (N2, L2) and out2_rng.shape == (N2, L2)
    assert jnp.allclose(out2_eval, mu2, atol=5e-2, rtol=2e-2)
    assert jnp.allclose(out2_eps, mu2 + sig2 * eps2, atol=2e-1, rtol=5e-2)
    eps2_rng = jax.random.normal(kr2, (N2, L2), dtype=jnp.float32)
    assert jnp.allclose(out2_rng, mu2 + sig2 * eps2_rng, atol=2e-1, rtol=5e-2)
    assert jnp.allclose(out2_bf16, mu2, atol=2e-1, rtol=1e-1)
    assert bool(jnp.all(jnp.isfinite(out2_rng)))

    print("KERNEL_OK")
</pallas_src>

<mosaic_0001>
module attributes {stable_mosaic.version = 11 : i64} {
  func.func @_eval_kernel(%arg0: i32, %arg1: memref<8x32xf32, #tpu.memory_space<vmem>>, %arg2: memref<32x128xf32, #tpu.memory_space<vmem>>, %arg3: memref<1x128xf32, #tpu.memory_space<vmem>>, %arg4: memref<8x16xf32, #tpu.memory_space<vmem>>) attributes {dimension_semantics = [#tpu.dimension_semantics<parallel>], iteration_bounds = array<i64: 1>, scalar_prefetch = 0 : i64, scratch_operands = 0 : i64, tpu.core_type = #tpu.core_type<tc>, window_params = [{transform_indices = @transform_0, window_bounds = array<i64: 8, 32>}, {transform_indices = @transform_1, window_bounds = array<i64: 32, 128>}, {transform_indices = @transform_2, window_bounds = array<i64: 1, 128>}, {transform_indices = @transform_3, window_bounds = array<i64: 8, 16>}]} {
    %c0 = arith.constant 0 : index
    %c0_0 = arith.constant 0 : index
    %0 = vector.load %arg1[%c0, %c0_0] : memref<8x32xf32, #tpu.memory_space<vmem>>, vector<8x32xf32>
    %c0_1 = arith.constant 0 : index
    %c0_2 = arith.constant 0 : index
    %1 = vector.load %arg2[%c0_1, %c0_2] : memref<32x128xf32, #tpu.memory_space<vmem>>, vector<32x128xf32>
    %cst = arith.constant dense<0.000000e+00> : vector<8x128xf32>
    %2 = tpu.matmul %0, %1, %cst {dimension_numbers = #tpu.dot_dimension_numbers<[1], [0], [0], [1], [0, 0, 1, 1], [], []>} : vector<8x32xf32>, vector<32x128xf32>, vector<8x128xf32> -> vector<8x128xf32>
    %c0_3 = arith.constant 0 : index
    %c0_4 = arith.constant 0 : index
    %3 = vector.load %arg3[%c0_3, %c0_4] : memref<1x128xf32, #tpu.memory_space<vmem>>, vector<1x128xf32>
    %4 = vector.broadcast %3 : vector<1x128xf32> to vector<8x128xf32>
    %5 = arith.addf %2, %4 : vector<8x128xf32>
    %6 = vector.extract_strided_slice %5 {offsets = [0, 0], sizes = [8, 16], strides = [1, 1]} : vector<8x128xf32> to vector<8x16xf32>
    %c0_5 = arith.constant 0 : index
    %c0_6 = arith.constant 0 : index
    %7 = vector.load %arg4[%c0_5, %c0_6] : memref<8x16xf32, #tpu.memory_space<vmem>>, vector<8x16xf32>
    tpu.vector_store %arg4[%c0_5, %c0_6], %6 {strides = array<i32>} : memref<8x16xf32, #tpu.memory_space<vmem>>, vector<8x16xf32>,
    return
  }
  func.func @transform_0(%arg0: i32) -> (i32, i32) {
    %c0_i32 = arith.constant 0 : i32
    %c0_i32_0 = arith.constant 0 : i32
    return %arg0, %c0_i32 : i32, i32
  }
  func.func @transform_1(%arg0: i32) -> (i32, i32) {
    %c0_i32 = arith.constant 0 : i32
    %c0_i32_0 = arith.constant 0 : i32
    %c0_i32_1 = arith.constant 0 : i32
    return %c0_i32, %c0_i32_0 : i32, i32
  }
  func.func @transform_2(%arg0: i32) -> (i32, i32) {
    %c0_i32 = arith.constant 0 : i32
    %c0_i32_0 = arith.constant 0 : i32
    %c0_i32_1 = arith.constant 0 : i32
    return %c0_i32, %c0_i32_0 : i32, i32
  }
  func.func @transform_3(%arg0: i32) -> (i32, i32) {
    %c0_i32 = arith.constant 0 : i32
    %c0_i32_0 = arith.constant 0 : i32
    return %arg0, %c0_i32 : i32, i32
  }
}

</mosaic_0001>

<llo_original>
// kernel: tpu_custom_call.1
$region0: #{tpu_custom_call.1}
  #allocation0 [shape = 'u32[]', space=smem, size = 0x4, offset = 0x4, fixed_abs, tag = 'smem constant byte address 0x4 - core index']
  #allocation1 [shape = 'u32[72,128]{1,0:T(1,128)}', space=vmem, size = 0x9000, scoped, tag = 'internal scratch']
  %s0 = inlined_call_operand.hbm [shape: f32[2,32], index: 0, kind: input, shape index: {}]
  %s1 = inlined_call_operand.hbm [shape: f32[32,256], index: 1, kind: input, shape index: {}]
  %s2 = inlined_call_operand.hbm [shape: f32[1,256], index: 2, kind: input, shape index: {}]
  %s3 = inlined_call_operand.hbm [shape: f32[2,16], index: 3, kind: output, shape index: {}]
  %s4 = sld [smem:[#allocation0]]
  $region34: #{tpu_custom_call.1} parent=0
    _
  %s6 = ssub.s32 1, %s4
  %s7 = scalar_select 0, %s6, %s4
  $region1: #{tpu_custom_call.1} parent=0
    #allocation2 [shape = 'u8[4096]{0}', space=vmem, size = 0x1000, scoped, tag = 'input window, operand 0, single buffered']
    #allocation3 [shape = 's32[1]{0}', space=sflag, size = 0x4, scoped, tag = 'scoped memory for tpu_custom_call.1']
    #allocation4 [shape = 's32[1]{0}', space=sflag, size = 0x4, scoped, tag = 'scoped memory for tpu_custom_call.1']
    #allocation5 [shape = 'u8[16384]{0}', space=vmem, size = 0x4000, scoped, tag = 'input window, operand 1, single buffered']
    #allocation6 [shape = 's32[1]{0}', space=sflag, size = 0x4, scoped, tag = 'scoped memory for tpu_custom_call.1']
    #allocation7 [shape = 'u8[512]{0}', space=vmem, size = 0x400, scoped, tag = 'input window, operand 2, single buffered']
    #allocation8 [shape = 'u8[4096]{0}', space=vmem, size = 0x1000, scoped, tag = 'output window, operand 0, single buffered']
    %8 = vsyncpa [#allocation3], 0
    %9 = vsyncpa [#allocation6], 0
    %10 = vsyncpa [#allocation4], 0
    // Predicated region
    $region2: #{tpu_custom_call.1} parent=1 // pred_check
      _
    $region3: #{tpu_custom_call.1} parent=1 // pred_check_branch
      %12 = sbr.rel (0) target = $region5
    $region4: #{tpu_custom_call.1} parent=1 // pred_region
      %14 = vsyncadd [#allocation3], 96
      %s15 = sshll.u32 %s0, 4
      %s16 = int_to_ptr.hbm [resolvable:$true] %s15
      %s17 = sshll.u32 [#allocation2], 4
      %s18 = int_to_ptr.vmem [resolvable:$true] %s17
      %23 = dma.hbm_to_vmem [thread:$0]  %s16, 32, %s18, [#allocation3], 32, 32, 2
    $region5: #{tpu_custom_call.1} parent=1 // pred_fallthru
      _
    // Predicated region
    $region6: #{tpu_custom_call.1} parent=1 // pred_check
      _
    $region7: #{tpu_custom_call.1} parent=1 // pred_check_branch
      %25 = sbr.rel (0) target = $region9
    $region8: #{tpu_custom_call.1} parent=1 // pred_region
      %27 = vsyncadd [#allocation6], 0
      %s28 = sshll.u32 %s1, 4
      %s29 = int_to_ptr.hbm [resolvable:$true] %s28
      %s30 = sshll.u32 [#allocation5], 4
      %s31 = int_to_ptr.vmem [resolvable:$true] %s30
      %36 = dma.hbm_to_vmem [thread:$0]  %s29, 512, %s31, [#allocation6], 256, 128, 8
    $region9: #{tpu_custom_call.1} parent=1 // pred_fallthru
      _
    // Predicated region
    $region10: #{tpu_custom_call.1} parent=1 // pred_check
      _
    $region11: #{tpu_custom_call.1} parent=1 // pred_check_branch
      %38 = sbr.rel (0) target = $region13
    $region12: #{tpu_custom_call.1} parent=1 // pred_region
      %40 = vsyncadd [#allocation6], 0
      %s42 = sshll.u32 %s2, 4
      %s43 = int_to_ptr.hbm [resolvable:$true] %s42
      %s44 = sshll.u32 [#allocation7], 4
      %s45 = int_to_ptr.vmem [resolvable:$true] %s44
      %47 = dma.hbm_to_vmem [thread:$0]  %s43, 16, %s45, [#allocation6]
    $region13: #{tpu_custom_call.1} parent=1 // pred_fallthru
      _
    // Predicated region
    $region14: #{tpu_custom_call.1} parent=1 // pred_check
      _
    $region15: #{tpu_custom_call.1} parent=1 // pred_check_branch
      %49 = sbr.rel (0) target = $region17
    $region16: #{tpu_custom_call.1} parent=1 // pred_region
      %51 = dma.done [#allocation3], 128
    $region17: #{tpu_custom_call.1} parent=1 // pred_fallthru
      _
    // Predicated region
    $region18: #{tpu_custom_call.1} parent=1 // pred_check
      _
    $region19: #{tpu_custom_call.1} parent=1 // pred_check_branch
      %53 = sbr.rel (0) target = $region21
    $region20: #{tpu_custom_call.1} parent=1 // pred_region
      %55 = dma.done [#allocation6], 512
    $region21: #{tpu_custom_call.1} parent=1 // pred_fallthru
      _
    // Predicated region
    $region22: #{tpu_custom_call.1} parent=1 // pred_check
      _
    $region23: #{tpu_custom_call.1} parent=1 // pred_check_branch
      %57 = sbr.rel (0) target = $region25
    $region24: #{tpu_custom_call.1} parent=1 // pred_region
      %59 = dma.done [#allocation6], 16
    $region25: #{tpu_custom_call.1} parent=1 // pred_fallthru
      _
    %v60 = vld [vmem:[#allocation2] sm:$0xff]
    %v61 = vld [vmem:[#allocation5] sm:$0xff]
    %v62 = vld [vmem:[#allocation5 + $0x8] sm:$0xff]
    %v63 = vld [vmem:[#allocation5 + $0x10] sm:$0xff]
    %v64 = vld [vmem:[#allocation5 + $0x18] sm:$0xff]
    %v65 = vld [vmem:[#allocation7] sm:$0x1]
    %v67 = vperm.slane %v65, 0
    %vm69 = vcmask 261120
    %v71 = vsel %vm69, %v60, 0
    %73 = vmatpush.msra.mxu0 0.0
    %74 = vmatpush.msra.mxu0 0.0
    %75 = vmatpush.msra.mxu0 0.0
    %76 = vmatpush.msra.mxu0 0.0
    %77 = vmatpush.msra.mxu0 0.0
    %78 = vmatpush.msra.mxu0 0.0
    %79 = vmatpush.msra.mxu0 0.0
    %80 = vmatpush.msra.mxu0 0.0
    %81 = vmatpush.msra.mxu0 0.0
    %82 = vmatpush.msra.mxu0 0.0
    %83 = vmatpush.msra.mxu0 0.0
    %84 = vmatpush.msra.mxu0 0.0
    %85 = vmatpush.msra.mxu0 %v64
    %86 = vmatpush.msra.mxu0 %v63
    %87 = vmatpush.msra.mxu0 %v62
    %88 = vmatpush.msra.mxu0 %v61
    %89 = vmatmul.f32.gmra.mxu0 %v71
    %v90 = vpop.f32.mrf.mxu0
    %v91 = vadd.f32 %v67, %v90
    %92 = vdwg.mxu0
    %vm93 = vcmask 130048
    %94 = vst.msk [vmem:[#allocation8] sm:$0xff] %vm93, %v91
    // Predicated region
    $region26: #{tpu_custom_call.1} parent=1 // pred_check
      _
    $region27: #{tpu_custom_call.1} parent=1 // pred_check_branch
      %96 = sbr.rel (0) target = $region29
    $region28: #{tpu_custom_call.1} parent=1 // pred_region
      %98 = vsyncadd [#allocation4], 96
      %s99 = sshll.u32 [#allocation8], 4
      %s100 = int_to_ptr.vmem [resolvable:$true] %s99
      %s101 = sshll.u32 %s3, 4
      %s102 = int_to_ptr.hbm [resolvable:$true] %s101
      %107 = dma.vmem_to_hbm [thread:$0]  %s100, 32, %s102, [#allocation4], 32, 32, 2
    $region29: #{tpu_custom_call.1} parent=1 // pred_fallthru
      _
    // Predicated region
    $region30: #{tpu_custom_call.1} parent=1 // pred_check
      _
    $region31: #{tpu_custom_call.1} parent=1 // pred_check_branch
      %109 = sbr.rel (0) target = $region33
    $region32: #{tpu_custom_call.1} parent=1 // pred_region
      %111 = dma.done [#allocation4], 128
    $region33: #{tpu_custom_call.1} parent=1 // pred_fallthru
      _
    %112 = vsyncpa [#allocation3], 1
    %113 = vsyncpa [#allocation6], 1
    %114 = vsyncpa [#allocation4], 1

</llo_original>
